<compile_context>
chip_gen: v6e
topology: v6e:2x2x1
jax: 0.10.0
libtpu: 0.0.40
codegen_flags: <defaults>
</compile_context>

<pallas_src>
import functools

import jax
import jax.numpy as jnp
from jax.experimental import pallas as pl
from jax.experimental.pallas import tpu as pltpu


# ------------------------------ helpers -----------------------------------

def _round_up(v, m):
    return ((v + m - 1) // m) * m


def _pick_tile(dim, candidates):
    for t in candidates:
        if t <= dim and dim % t == 0:
            return t
    return dim


def _vmem_limit_bytes():
    """Per-generation VMEM limit with headroom for Mosaic internal scratch."""
    cap = 128 * 1024 * 1024
    try:
        cap = int(pltpu.get_tpu_info().vmem_capacity_bytes)
    except Exception:
        pass
    # ~48 MiB on v7x (64 MiB physical), ~96 MiB on v5e/v6e (128 MiB physical).
    return (cap * 3) // 4


def _pad2(x, rows, cols, dtype):
    x = x.astype(dtype)
    return jnp.pad(x, ((0, rows - x.shape[0]), (0, cols - x.shape[1])))


# --------------------------- fused (small-N) path --------------------------

def _gcn_fused_kernel(*refs, num_layers, padded_dims):
    """Fused multi-layer GCN: h_{l+1} = ReLU(A_hat @ h_l @ W_l + b_l).

    refs: A_hat(bf16), X(bf16), W_0..W_{L-1}(bf16), b_0..b_{L-1}(f32), out(f32)
    The hidden activation is an SSA value — no scratch, no round-trip.
    """
    a_ref, x_ref = refs[0], refs[1]
    w_refs = refs[2:2 + num_layers]
    b_refs = refs[2 + num_layers:2 + 2 * num_layers]
    o_ref = refs[2 + 2 * num_layers]

    a = a_ref[...]
    h = x_ref[...]
    for i in range(num_layers):
        p_in, p_out = padded_dims[i], padded_dims[i + 1]
        w = w_refs[i][...]
        b = b_refs[i][...]
        if p_out > p_in:
            # Aggregate first over the narrower (padded) feature dim.
            t = jnp.dot(a, h, preferred_element_type=jnp.float32)
            y = jnp.dot(t.astype(jnp.bfloat16), w,
                        preferred_element_type=jnp.float32)
        else:
            # Transform first.
            t = jnp.dot(h, w, preferred_element_type=jnp.float32)
            y = jnp.dot(a, t.astype(jnp.bfloat16),
                        preferred_element_type=jnp.float32)
        y = y + b  # f32 epilogue
        if i < num_layers - 1:
            h = jnp.maximum(y, 0.0).astype(jnp.bfloat16)   # SSA value
            # dropout: identity (inference mode)
        else:
            o_ref[...] = y.astype(o_ref.dtype)


def _gcn_forward_fused(a_norm, x, weights, biases, dims, vmem_limit):
    n = x.shape[0]
    num_layers = len(weights)
    n_pad = _round_up(n, 128)
    p = [_round_up(d, 128) for d in dims]

    a_p = _pad2(a_norm, n_pad, n_pad, jnp.bfloat16)
    x_p = _pad2(x, n_pad, p[0], jnp.bfloat16)
    w_p = [_pad2(weights[i], p[i], p[i + 1], jnp.bfloat16)
           for i in range(num_layers)]
    b_p = [_pad2(biases[i].reshape(1, -1), 1, p[i + 1], jnp.float32)
           for i in range(num_layers)]

    kernel = functools.partial(_gcn_fused_kernel, num_layers=num_layers,
                               padded_dims=tuple(p))
    vmem = pl.BlockSpec(memory_space=pltpu.MemorySpace.VMEM)

    out_p = pl.pallas_call(
        kernel,
        out_shape=jax.ShapeDtypeStruct((n_pad, p[-1]), jnp.float32),
        in_specs=[vmem] * (2 + 2 * num_layers),
        out_specs=vmem,
        compiler_params=pltpu.CompilerParams(vmem_limit_bytes=vmem_limit),
    )(a_p, x_p, *w_p, *b_p)

    return out_p[:n, :dims[-1]]


# ---------------------------- tiled (large-N) path --------------------------

def _tiled_mm_kernel(a_ref, b_ref, bias_ref, o_ref, acc_ref, *, relu):
    @pl.when(pl.program_id(2) == 0)
    def _():
        acc_ref[...] = jnp.zeros_like(acc_ref)

    acc_ref[...] += jnp.dot(a_ref[...], b_ref[...],
                            preferred_element_type=jnp.float32)

    @pl.when(pl.program_id(2) == pl.num_programs(2) - 1)
    def _():
        y = acc_ref[...] + bias_ref[...]
        if relu:
            y = jnp.maximum(y, 0.0)
        o_ref[...] = y.astype(o_ref.dtype)


def _tiled_matmul(a, b, bias, *, relu, out_dtype, vmem_limit):
    M, K = a.shape
    K2, N = b.shape
    assert K == K2
    tm = _pick_tile(M, (256, 128))
    tn = _pick_tile(N, (256, 128))
    tk = _pick_tile(K, (512, 256, 128))
    grid = (M // tm, N // tn, K // tk)

    return pl.pallas_call(
        functools.partial(_tiled_mm_kernel, relu=relu),
        out_shape=jax.ShapeDtypeStruct((M, N), out_dtype),
        grid_spec=pltpu.PrefetchScalarGridSpec(
            num_scalar_prefetch=0, grid=grid,
            in_specs=[pl.BlockSpec((tm, tk), lambda i, j, k: (i, k)),
                      pl.BlockSpec((tk, tn), lambda i, j, k: (k, j)),
                      pl.BlockSpec((1, tn), lambda i, j, k: (0, j))],
            out_specs=pl.BlockSpec((tm, tn), lambda i, j, k: (i, j)),
            scratch_shapes=[pltpu.VMEM((tm, tn), jnp.float32)]),
        compiler_params=pltpu.CompilerParams(
            dimension_semantics=("parallel", "parallel", "arbitrary"),
            vmem_limit_bytes=vmem_limit),
    )(a, b, bias)


def _gcn_forward_tiled(a_norm, x, weights, biases, dims, vmem_limit):
    n = x.shape[0]
    num_layers = len(weights)
    n_pad = _round_up(n, 512)               # divisible by TM=256 and TK=512
    p = [_round_up(d, 256) for d in dims]   # divisible by TN=256

    a_p = _pad2(a_norm, n_pad, n_pad, jnp.bfloat16)
    h = _pad2(x, n_pad, p[0], jnp.bfloat16)

    y = None
    for i in range(num_layers):
        w_p = _pad2(weights[i], p[i], p[i + 1], jnp.bfloat16)
        b_p = _pad2(biases[i].reshape(1, -1), 1, p[i + 1], jnp.float32)
        relu = i < num_layers - 1
        last = i == num_layers - 1
        out_dt = jnp.float32 if last else jnp.bfloat16
        if p[i + 1] > p[i]:
            # Aggregate first: T = A @ H, then Y = T @ W (+b, ReLU epilogue).
            t = _tiled_matmul(a_p, h, jnp.zeros((1, p[i]), jnp.float32),
                              relu=False, out_dtype=jnp.bfloat16,
                              vmem_limit=vmem_limit)
            y = _tiled_matmul(t, w_p, b_p, relu=relu, out_dtype=out_dt,
                              vmem_limit=vmem_limit)
        else:
            # Transform first: T = H @ W, then Y = A @ T (+b, ReLU epilogue).
            t = _tiled_matmul(h, w_p, jnp.zeros((1, p[i + 1]), jnp.float32),
                              relu=False, out_dtype=jnp.bfloat16,
                              vmem_limit=vmem_limit)
            y = _tiled_matmul(a_p, t, b_p, relu=relu, out_dtype=out_dt,
                              vmem_limit=vmem_limit)
        h = y
    return y[:n, :dims[-1]].astype(jnp.float32)


# ------------------------------ top-level forward --------------------------

@functools.partial(jax.jit, static_argnames=("dims", "force_tiled"))
def gcn_forward(a_norm, x, weights, biases, dims, force_tiled=False):
    """Pick the fully-fused path if A_hat + operands fit VMEM, else tiled."""
    n = x.shape[0]
    num_layers = len(weights)
    n_pad = _round_up(n, 128)
    p = [_round_up(d, 128) for d in dims]
    vmem_limit = _vmem_limit_bytes()

    p_max = max(p)
    fused_bytes = (2 * n_pad * n_pad                                    # A bf16
                   + 2 * n_pad * p[0]                                   # X bf16
                   + sum(2 * p[i] * p[i + 1] for i in range(num_layers))  # W bf16
                   + 4 * n_pad * p_max                                  # f32 temp
                   + 2 * n_pad * p_max                                  # bf16 hidden
                   + 4 * n_pad * p[-1])                                 # f32 out

    if force_tiled or fused_bytes > (vmem_limit * 7) // 10:
        return _gcn_forward_tiled(a_norm, x, weights, biases, dims, vmem_limit)
    return _gcn_forward_fused(a_norm, x, weights, biases, dims, vmem_limit)


# ----------------------------- glue (plain JAX) -----------------------------

def gcn_normalize(edge_index, num_nodes):
    """Dense D^{-1/2} (A + I) D^{-1/2} from edge_index [2, num_edges]."""
    src, dst = edge_index[0], edge_index[1]
    a = jnp.zeros((num_nodes, num_nodes), dtype=jnp.float32)
    a = a.at[dst, src].add(1.0)                       # message: source -> target
    a = a + jnp.eye(num_nodes, dtype=jnp.float32)     # self-loops
    deg = jnp.sum(a, axis=1)
    d_inv_sqrt = jnp.where(deg > 0, 1.0 / jnp.sqrt(deg), 0.0)
    return d_inv_sqrt[:, None] * a * d_inv_sqrt[None, :]


def gcn_reference(a_norm, x, weights, biases):
    """Pure-JAX f32 reference for correctness checking."""
    h = x
    for i in range(len(weights)):
        h = a_norm @ (h @ weights[i]) + biases[i]
        if i < len(weights) - 1:
            h = jnp.maximum(h, 0.0)
    return h


class GCNPallas:
    """num_layers GCN layers; ReLU (+ identity dropout) between layers."""

    def __init__(self, input_dim, hidden_dim, output_dim, num_layers=2,
                 dropout=0.5, key=jax.random.PRNGKey(0)):
        self.num_layers = num_layers
        self.dims = tuple([input_dim] + [hidden_dim] * (num_layers - 1)
                          + [output_dim])
        self.weights = []
        self.biases = []
        for i in range(num_layers):
            key, wk = jax.random.split(key)
            fan_in, fan_out = self.dims[i], self.dims[i + 1]
            limit = jnp.sqrt(6.0 / (fan_in + fan_out))   # Glorot-uniform
            w = jax.random.uniform(wk, (fan_in, fan_out), jnp.float32,
                                   minval=-limit, maxval=limit)
            b = jnp.zeros((fan_out,), jnp.float32)
            self.weights.append(w)
            self.biases.append(b)

    def __call__(self, x, edge_index, force_tiled=False):
        n = x.shape[0]
        a_norm = gcn_normalize(edge_index, n)
        return gcn_forward(a_norm, x.astype(jnp.float32),
                           tuple(self.weights), tuple(self.biases),
                           self.dims, force_tiled)


# --------------------------------- main -------------------------------------

if __name__ == "__main__":
    key = jax.random.PRNGKey(0)

    num_nodes = 16
    input_dim = 8
    hidden_dim = 32
    output_dim = 4

    k_x, k_model = jax.random.split(key)
    x = jax.random.normal(k_x, (num_nodes, input_dim), dtype=jnp.float32)

    # Symmetric ring graph: edges (i, i+1) and (i+1, i).
    idx = jnp.arange(num_nodes)
    nxt = (idx + 1) % num_nodes
    edge_index = jnp.stack(
        [jnp.concatenate([idx, nxt]), jnp.concatenate([nxt, idx])], axis=0
    ).astype(jnp.int32)  # [2, 2*num_nodes]

    model = GCNPallas(input_dim, hidden_dim, output_dim, num_layers=2,
                      dropout=0.5, key=k_model)

    # Reference (pure JAX, f32).
    a_norm = gcn_normalize(edge_index, num_nodes)
    ref = gcn_reference(a_norm, x, model.weights, model.biases)

    # Fused (small-graph) path.
    out_fused = model(x, edge_index)
    jax.block_until_ready(out_fused)
    assert out_fused.shape == (num_nodes, output_dim)
    assert jnp.allclose(out_fused, ref, atol=5e-2, rtol=5e-2)

    # Tiled (large-graph) fallback path, forced on the same small graph.
    out_tiled = model(x, edge_index, force_tiled=True)
    jax.block_until_ready(out_tiled)
    assert out_tiled.shape == (num_nodes, output_dim)
    assert jnp.allclose(out_tiled, ref, atol=5e-2, rtol=5e-2)

    print("KERNEL_OK")
</pallas_src>

<mosaic_0001>
module attributes {stable_mosaic.version = 11 : i64} {
  func.func @_gcn_fused_kernel(%arg0: memref<128x128xbf16, #tpu.memory_space<vmem>>, %arg1: memref<128x128xbf16, #tpu.memory_space<vmem>>, %arg2: memref<128x128xbf16, #tpu.memory_space<vmem>>, %arg3: memref<128x128xbf16, #tpu.memory_space<vmem>>, %arg4: memref<1x128xf32, #tpu.memory_space<vmem>>, %arg5: memref<1x128xf32, #tpu.memory_space<vmem>>, %arg6: memref<128x128xf32, #tpu.memory_space<vmem>>) attributes {dimension_semantics = [], scalar_prefetch = 0 : i64, scratch_operands = 0 : i64, tpu.core_type = #tpu.core_type<tc>} {
    %c0 = arith.constant 0 : index
    %c0_0 = arith.constant 0 : index
    %0 = vector.load %arg0[%c0, %c0_0] : memref<128x128xbf16, #tpu.memory_space<vmem>>, vector<128x128xbf16>
    %c0_1 = arith.constant 0 : index
    %c0_2 = arith.constant 0 : index
    %1 = vector.load %arg1[%c0_1, %c0_2] : memref<128x128xbf16, #tpu.memory_space<vmem>>, vector<128x128xbf16>
    %c0_3 = arith.constant 0 : index
    %c0_4 = arith.constant 0 : index
    %2 = vector.load %arg2[%c0_3, %c0_4] : memref<128x128xbf16, #tpu.memory_space<vmem>>, vector<128x128xbf16>
    %c0_5 = arith.constant 0 : index
    %c0_6 = arith.constant 0 : index
    %3 = vector.load %arg4[%c0_5, %c0_6] : memref<1x128xf32, #tpu.memory_space<vmem>>, vector<1x128xf32>
    %cst = arith.constant dense<0.000000e+00> : vector<128x128xf32>
    %4 = tpu.matmul %1, %2, %cst {dimension_numbers = #tpu.dot_dimension_numbers<[1], [0], [0], [1], [0, 0, 1, 1], [], []>} : vector<128x128xbf16>, vector<128x128xbf16>, vector<128x128xf32> -> vector<128x128xf32>
    %5 = arith.truncf %4 : vector<128x128xf32> to vector<128x128xbf16>
    %cst_7 = arith.constant dense<0.000000e+00> : vector<128x128xf32>
    %6 = tpu.matmul %0, %5, %cst_7 {dimension_numbers = #tpu.dot_dimension_numbers<[1], [0], [0], [1], [0, 0, 1, 1], [], []>} : vector<128x128xbf16>, vector<128x128xbf16>, vector<128x128xf32> -> vector<128x128xf32>
    %7 = vector.broadcast %3 : vector<1x128xf32> to vector<128x128xf32>
    %8 = arith.addf %6, %7 : vector<128x128xf32>
    %cst_8 = arith.constant 0.000000e+00 : f32
    %9 = vector.broadcast %cst_8 : f32 to vector<128x128xf32>
    %10 = arith.maximumf %8, %9 : vector<128x128xf32>
    %11 = arith.truncf %10 : vector<128x128xf32> to vector<128x128xbf16>
    %c0_9 = arith.constant 0 : index
    %c0_10 = arith.constant 0 : index
    %12 = vector.load %arg3[%c0_9, %c0_10] : memref<128x128xbf16, #tpu.memory_space<vmem>>, vector<128x128xbf16>
    %c0_11 = arith.constant 0 : index
    %c0_12 = arith.constant 0 : index
    %13 = vector.load %arg5[%c0_11, %c0_12] : memref<1x128xf32, #tpu.memory_space<vmem>>, vector<1x128xf32>
    %cst_13 = arith.constant dense<0.000000e+00> : vector<128x128xf32>
    %14 = tpu.matmul %11, %12, %cst_13 {dimension_numbers = #tpu.dot_dimension_numbers<[1], [0], [0], [1], [0, 0, 1, 1], [], []>} : vector<128x128xbf16>, vector<128x128xbf16>, vector<128x128xf32> -> vector<128x128xf32>
    %15 = arith.truncf %14 : vector<128x128xf32> to vector<128x128xbf16>
    %cst_14 = arith.constant dense<0.000000e+00> : vector<128x128xf32>
    %16 = tpu.matmul %0, %15, %cst_14 {dimension_numbers = #tpu.dot_dimension_numbers<[1], [0], [0], [1], [0, 0, 1, 1], [], []>} : vector<128x128xbf16>, vector<128x128xbf16>, vector<128x128xf32> -> vector<128x128xf32>
    %17 = vector.broadcast %13 : vector<1x128xf32> to vector<128x128xf32>
    %18 = arith.addf %16, %17 : vector<128x128xf32>
    %c0_15 = arith.constant 0 : index
    %c0_16 = arith.constant 0 : index
    %19 = vector.load %arg6[%c0_15, %c0_16] : memref<128x128xf32, #tpu.memory_space<vmem>>, vector<128x128xf32>
    tpu.vector_store %arg6[%c0_15, %c0_16], %18 {strides = array<i32>} : memref<128x128xf32, #tpu.memory_space<vmem>>, vector<128x128xf32>,
    return
  }
}

</mosaic_0001>

<llo_original>
// kernel: gcn_forward.1
$region0: #{gcn_forward.1}
  #allocation0 [shape = 'u32[]', space=smem, size = 0x4, offset = 0x4, fixed_abs, tag = 'smem constant byte address 0x4 - core index']
  #allocation1 [shape = 'u32[144,128]{1,0:T(1,128)}', space=vmem, size = 0x12000, scoped, tag = 'internal scratch']
  %s0 = inlined_call_operand.vmem [shape: bf16[128,128], index: 0, kind: input, shape index: {}]
  %s1 = inlined_call_operand.vmem [shape: bf16[128,128], index: 1, kind: input, shape index: {}]
  %s2 = inlined_call_operand.vmem [shape: bf16[128,128], index: 2, kind: input, shape index: {}]
  %s3 = inlined_call_operand.vmem [shape: bf16[128,128], index: 3, kind: input, shape index: {}]
  %s4 = inlined_call_operand.vmem [shape: f32[1,128], index: 4, kind: input, shape index: {}]
  %s5 = inlined_call_operand.vmem [shape: f32[1,128], index: 5, kind: input, shape index: {}]
  %s6 = inlined_call_operand.vmem [shape: f32[128,128], index: 6, kind: output, shape index: {}]
  %s7 = sld [smem:[#allocation0]]
  $region34: #{gcn_forward.1} parent=0
    _
  %s9 = ssub.s32 1, %s7
  %s10 = scalar_select 0, %s9, %s7
  // Predicated region
  $region2: #{gcn_forward.1} parent=0 // pred_check
    _
  $region3: #{gcn_forward.1} parent=0 // pred_check_branch
    %12 = sbr.rel (0) target = $region5
  $region4: #{gcn_forward.1} parent=0 // pred_region
    _
  $region5: #{gcn_forward.1} parent=0 // pred_fallthru
    _
  // Predicated region
  $region6: #{gcn_forward.1} parent=0 // pred_check
    _
  $region7: #{gcn_forward.1} parent=0 // pred_check_branch
    %14 = sbr.rel (0) target = $region9
  $region8: #{gcn_forward.1} parent=0 // pred_region
    _
  $region9: #{gcn_forward.1} parent=0 // pred_fallthru
    _
  // Predicated region
  $region10: #{gcn_forward.1} parent=0 // pred_check
    _
  $region11: #{gcn_forward.1} parent=0 // pred_check_branch
    %16 = sbr.rel (0) target = $region13
  $region12: #{gcn_forward.1} parent=0 // pred_region
    _
  $region13: #{gcn_forward.1} parent=0 // pred_fallthru
    _
  // Predicated region
  $region14: #{gcn_forward.1} parent=0 // pred_check
    _
  $region15: #{gcn_forward.1} parent=0 // pred_check_branch
    %18 = sbr.rel (0) target = $region17
  $region16: #{gcn_forward.1} parent=0 // pred_region
    _
  $region17: #{gcn_forward.1} parent=0 // pred_fallthru
    _
  // Predicated region
  $region18: #{gcn_forward.1} parent=0 // pred_check
    _
  $region19: #{gcn_forward.1} parent=0 // pred_check_branch
    %20 = sbr.rel (0) target = $region21
  $region20: #{gcn_forward.1} parent=0 // pred_region
    _
  $region21: #{gcn_forward.1} parent=0 // pred_fallthru
    _
  // Predicated region
  $region22: #{gcn_forward.1} parent=0 // pred_check
    _
  $region23: #{gcn_forward.1} parent=0 // pred_check_branch
    %22 = sbr.rel (0) target = $region25
  $region24: #{gcn_forward.1} parent=0 // pred_region
    _
  $region25: #{gcn_forward.1} parent=0 // pred_fallthru
    _
  %v24 = vld [vmem:[%s0] sm:$0xf]
  %v25 = vld [vmem:[%s0 + $0x4] sm:$0xf]
  %v26 = vld [vmem:[%s0 + $0x8] sm:$0xf]
  %v27 = vld [vmem:[%s0 + $0xc] sm:$0xf]
  %v28 = vld [vmem:[%s0 + $0x10] sm:$0xf]
  %v29 = vld [vmem:[%s0 + $0x14] sm:$0xf]
  %v30 = vld [vmem:[%s0 + $0x18] sm:$0xf]
  %v31 = vld [vmem:[%s0 + $0x1c] sm:$0xf]
  %v32 = vld [vmem:[%s0 + $0x20] sm:$0xf]
  %v33 = vld [vmem:[%s0 + $0x24] sm:$0xf]
  %v34 = vld [vmem:[%s0 + $0x28] sm:$0xf]
  %v35 = vld [vmem:[%s0 + $0x2c] sm:$0xf]
  %v36 = vld [vmem:[%s0 + $0x30] sm:$0xf]
  %v37 = vld [vmem:[%s0 + $0x34] sm:$0xf]
  %v38 = vld [vmem:[%s0 + $0x38] sm:$0xf]
  %v39 = vld [vmem:[%s0 + $0x3c] sm:$0xf]
  %v40 = vld [vmem:[%s1] sm:$0xf]
  %v41 = vld [vmem:[%s1 + $0x4] sm:$0xf]
  %v42 = vld [vmem:[%s1 + $0x8] sm:$0xf]
  %v43 = vld [vmem:[%s1 + $0xc] sm:$0xf]
  %v44 = vld [vmem:[%s1 + $0x10] sm:$0xf]
  %v45 = vld [vmem:[%s1 + $0x14] sm:$0xf]
  %v46 = vld [vmem:[%s1 + $0x18] sm:$0xf]
  %v47 = vld [vmem:[%s1 + $0x1c] sm:$0xf]
  %v48 = vld [vmem:[%s1 + $0x20] sm:$0xf]
  %v49 = vld [vmem:[%s1 + $0x24] sm:$0xf]
  %v50 = vld [vmem:[%s1 + $0x28] sm:$0xf]
  %v51 = vld [vmem:[%s1 + $0x2c] sm:$0xf]
  %v52 = vld [vmem:[%s1 + $0x30] sm:$0xf]
  %v53 = vld [vmem:[%s1 + $0x34] sm:$0xf]
  %v54 = vld [vmem:[%s1 + $0x38] sm:$0xf]
  %v55 = vld [vmem:[%s1 + $0x3c] sm:$0xf]
  %v56 = vld [vmem:[%s2] sm:$0xf]
  %v57 = vld [vmem:[%s2 + $0x4] sm:$0xf]
  %v58 = vld [vmem:[%s2 + $0x8] sm:$0xf]
  %v59 = vld [vmem:[%s2 + $0xc] sm:$0xf]
  %v60 = vld [vmem:[%s2 + $0x10] sm:$0xf]
  %v61 = vld [vmem:[%s2 + $0x14] sm:$0xf]
  %v62 = vld [vmem:[%s2 + $0x18] sm:$0xf]
  %v63 = vld [vmem:[%s2 + $0x1c] sm:$0xf]
  %v64 = vld [vmem:[%s2 + $0x20] sm:$0xf]
  %v65 = vld [vmem:[%s2 + $0x24] sm:$0xf]
  %v66 = vld [vmem:[%s2 + $0x28] sm:$0xf]
  %v67 = vld [vmem:[%s2 + $0x2c] sm:$0xf]
  %v68 = vld [vmem:[%s2 + $0x30] sm:$0xf]
  %v69 = vld [vmem:[%s2 + $0x34] sm:$0xf]
  %v70 = vld [vmem:[%s2 + $0x38] sm:$0xf]
  %v71 = vld [vmem:[%s2 + $0x3c] sm:$0xf]
  %v72 = vld [vmem:[%s4] sm:$0x1]
  %v89 = vunpack.c.l.b16 %v40
  %v90 = vunpack.c.l.b16 %v41
  %v91 = vunpack.c.l.b16 %v42
  %v92 = vunpack.c.l.b16 %v43
  %v93 = vunpack.c.l.b16 %v44
  %v94 = vunpack.c.l.b16 %v45
  %v95 = vunpack.c.l.b16 %v46
  %v96 = vunpack.c.l.b16 %v47
  %v97 = vunpack.c.l.b16 %v48
  %v98 = vunpack.c.l.b16 %v49
  %v99 = vunpack.c.l.b16 %v50
  %v100 = vunpack.c.l.b16 %v51
  %v101 = vunpack.c.l.b16 %v52
  %v102 = vunpack.c.l.b16 %v53
  %v103 = vunpack.c.l.b16 %v54
  %v104 = vunpack.c.l.b16 %v55
  %v105 = vpack.c.b16 %v90, %v89
  %v106 = vpack.c.b16 %v92, %v91
  %v107 = vpack.c.b16 %v94, %v93
  %v108 = vpack.c.b16 %v96, %v95
  %v109 = vpack.c.b16 %v98, %v97
  %v110 = vpack.c.b16 %v100, %v99
  %v111 = vpack.c.b16 %v102, %v101
  %v112 = vpack.c.b16 %v104, %v103
  %v137 = vunpack.c.l.b16 %v56
  %v138 = vunpack.c.l.b16 %v57
  %v139 = vunpack.c.l.b16 %v58
  %v140 = vunpack.c.l.b16 %v59
  %v141 = vunpack.c.l.b16 %v60
  %v142 = vunpack.c.l.b16 %v61
  %v143 = vunpack.c.l.b16 %v62
  %v144 = vunpack.c.l.b16 %v63
  %v145 = vunpack.c.l.b16 %v64
  %v146 = vunpack.c.l.b16 %v65
  %v147 = vunpack.c.l.b16 %v66
  %v148 = vunpack.c.l.b16 %v67
  %v149 = vunpack.c.l.b16 %v68
  %v150 = vunpack.c.l.b16 %v69
  %v151 = vunpack.c.l.b16 %v70
  %v152 = vunpack.c.l.b16 %v71
  %v153 = vpack.c.b16 %v138, %v137
  %v154 = vpack.c.b16 %v140, %v139
  %v155 = vpack.c.b16 %v142, %v141
  %v156 = vpack.c.b16 %v144, %v143
  %v157 = vpack.c.b16 %v146, %v145
  %v158 = vpack.c.b16 %v148, %v147
  %v159 = vpack.c.b16 %v150, %v149
  %v160 = vpack.c.b16 %v152, %v151
  %169 = vmatprep.subr.bf16.mxu0 0
  %170 = vmatpush1.bf16.msra.mxu0 %v160
  %171 = vmatprep.subr.bf16.mxu0 0
  %172 = vmatpush1.bf16.msra.mxu0 %v159
  %173 = vmatprep.subr.bf16.mxu0 0
  %174 = vmatpush1.bf16.msra.mxu0 %v158
  %175 = vmatprep.subr.bf16.mxu0 0
  %176 = vmatpush1.bf16.msra.mxu0 %v157
  %177 = vmatprep.subr.bf16.mxu0 0
  %178 = vmatpush1.bf16.msra.mxu0 %v156
  %179 = vmatprep.subr.bf16.mxu0 0
  %180 = vmatpush1.bf16.msra.mxu0 %v155
  %181 = vmatprep.subr.bf16.mxu0 0
  %182 = vmatpush1.bf16.msra.mxu0 %v154
  %183 = vmatprep.subr.bf16.mxu0 0
  %184 = vmatpush1.bf16.msra.mxu0 %v153
  %185 = vmatprep.subr.bf16.mxu0 0
  %186 = vmatpush2.bf16.msra.mxu0 0
  %187 = vmatprep.subr.bf16.mxu0 0
  %188 = vmatpush2.bf16.msra.mxu0 0
  %189 = vmatprep.subr.bf16.mxu0 0
  %190 = vmatpush2.bf16.msra.mxu0 0
  %191 = vmatprep.subr.bf16.mxu0 0
  %192 = vmatpush2.bf16.msra.mxu0 0
  %193 = vmatprep.subr.bf16.mxu0 0
  %194 = vmatpush2.bf16.msra.mxu0 0
  %195 = vmatprep.subr.bf16.mxu0 0
  %196 = vmatpush2.bf16.msra.mxu0 0
  %197 = vmatprep.subr.bf16.mxu0 0
  %198 = vmatpush2.bf16.msra.mxu0 0
  %199 = vmatprep.subr.bf16.mxu0 0
  %200 = vmatpush2.bf16.msra.mxu0 0
  %201 = vmatprep.mubr.bf16.mxu0 0
  %202 = vmatmul.mubr.bf16.gmra.mxu0 %v105
  %v203 = vpop.f32.mrf.mxu0
  %v204 = vadd.f32 0.0, %v203
  %v205 = vpop.f32.mrf.mxu0
  %v206 = vpop.f32.mrf.mxu0
  %v207 = vadd.f32 0.0, %v206
  %v208 = vpop.f32.mrf.mxu0
  %209 = vmatprep.mubr.bf16.mxu0 0
  %210 = vmatmul.mubr.bf16.gmra.mxu0 %v106
  %v211 = vpop.f32.mrf.mxu0
  %v212 = vadd.f32 0.0, %v211
  %v213 = vpop.f32.mrf.mxu0
  %v214 = vpop.f32.mrf.mxu0
  %v215 = vadd.f32 0.0, %v214
  %v216 = vpop.f32.mrf.mxu0
  %217 = vmatprep.mubr.bf16.mxu0 0
  %218 = vmatmul.mubr.bf16.gmra.mxu0 %v107
  %v219 = vpop.f32.mrf.mxu0
  %v220 = vadd.f32 0.0, %v219
  %v221 = vpop.f32.mrf.mxu0
  %v222 = vpop.f32.mrf.mxu0
  %v223 = vadd.f32 0.0, %v222
  %v224 = vpop.f32.mrf.mxu0
  %225 = vmatprep.mubr.bf16.mxu0 0
  %226 = vmatmul.mubr.bf16.gmra.mxu0 %v108
  %v227 = vpop.f32.mrf.mxu0
  %v228 = vadd.f32 0.0, %v227
  %v229 = vpop.f32.mrf.mxu0
  %v230 = vpop.f32.mrf.mxu0
  %v231 = vadd.f32 0.0, %v230
  %v232 = vpop.f32.mrf.mxu0
  %233 = vmatprep.mubr.bf16.mxu0 0
  %234 = vmatmul.mubr.bf16.gmra.mxu0 %v109
  %v235 = vpop.f32.mrf.mxu0
  %v236 = vadd.f32 0.0, %v235
  %v237 = vpop.f32.mrf.mxu0
  %v238 = vpop.f32.mrf.mxu0
  %v239 = vadd.f32 0.0, %v238
  %v240 = vpop.f32.mrf.mxu0
  %241 = vmatprep.mubr.bf16.mxu0 0
  %242 = vmatmul.mubr.bf16.gmra.mxu0 %v110
  %v243 = vpop.f32.mrf.mxu0
  %v244 = vadd.f32 0.0, %v243
  %v245 = vpop.f32.mrf.mxu0
  %v246 = vpop.f32.mrf.mxu0
  %v247 = vadd.f32 0.0, %v246
  %v248 = vpop.f32.mrf.mxu0
  %249 = vmatprep.mubr.bf16.mxu0 0
  %250 = vmatmul.mubr.bf16.gmra.mxu0 %v111
  %v251 = vpop.f32.mrf.mxu0
  %v252 = vadd.f32 0.0, %v251
  %v253 = vpop.f32.mrf.mxu0
  %v254 = vpop.f32.mrf.mxu0
  %v255 = vadd.f32 0.0, %v254
  %v256 = vpop.f32.mrf.mxu0
  %257 = vmatprep.mubr.bf16.mxu0 0
  %258 = vmatmul.mubr.bf16.gmra.mxu0 %v112
  %v259 = vpop.f32.mrf.mxu0
  %v260 = vadd.f32 0.0, %v259
  %v261 = vpop.f32.mrf.mxu0
  %v262 = vpop.f32.mrf.mxu0
  %v263 = vadd.f32 0.0, %v262
  %v264 = vpop.f32.mrf.mxu0
  %265 = vdwg.mxu0
  %v266 = vpack.c.bf16 %v207, %v204
  %v267 = vpack.c.bf16 %v215, %v212
  %v268 = vpack.c.bf16 %v223, %v220
  %v269 = vpack.c.bf16 %v231, %v228
  %v270 = vpack.c.bf16 %v239, %v236
  %v271 = vpack.c.bf16 %v247, %v244
  %v272 = vpack.c.bf16 %v255, %v252
  %v273 = vpack.c.bf16 %v263, %v260
  %v275 = vlaneseq
  %v276 = vshrl.u32 %v275, 7
  %v277 = vsub.s32 0, %v276
  %v278 = vrot.slane %v72, %v277
  %v296 = vunpack.c.l.b16 %v24
  %v297 = vunpack.c.l.b16 %v25
  %v298 = vunpack.c.l.b16 %v26
  %v299 = vunpack.c.l.b16 %v27
  %v300 = vunpack.c.l.b16 %v28
  %v301 = vunpack.c.l.b16 %v29
  %v302 = vunpack.c.l.b16 %v30
  %v303 = vunpack.c.l.b16 %v31
  %v304 = vunpack.c.l.b16 %v32
  %v305 = vunpack.c.l.b16 %v33
  %v306 = vunpack.c.l.b16 %v34
  %v307 = vunpack.c.l.b16 %v35
  %v308 = vunpack.c.l.b16 %v36
  %v309 = vunpack.c.l.b16 %v37
  %v310 = vunpack.c.l.b16 %v38
  %v311 = vunpack.c.l.b16 %v39
  %v312 = vpack.c.b16 %v297, %v296
  %v313 = vpack.c.b16 %v299, %v298
  %v314 = vpack.c.b16 %v301, %v300
  %v315 = vpack.c.b16 %v303, %v302
  %v316 = vpack.c.b16 %v305, %v304
  %v317 = vpack.c.b16 %v307, %v306
  %v318 = vpack.c.b16 %v309, %v308
  %v319 = vpack.c.b16 %v311, %v310
  %328 = vmatprep.subr.bf16.mxu0 0
  %329 = vmatpush1.bf16.msra.mxu0 %v273
  %330 = vmatprep.subr.bf16.mxu0 0
  %331 = vmatpush1.bf16.msra.mxu0 %v272
  %332 = vmatprep.subr.bf16.mxu0 0
  %333 = vmatpush1.bf16.msra.mxu0 %v271
  %334 = vmatprep.subr.bf16.mxu0 0
  %335 = vmatpush1.bf16.msra.mxu0 %v270
  %336 = vmatprep.subr.bf16.mxu0 0
  %337 = vmatpush1.bf16.msra.mxu0 %v269
  %338 = vmatprep.subr.bf16.mxu0 0
  %339 = vmatpush1.bf16.msra.mxu0 %v268
  %340 = vmatprep.subr.bf16.mxu0 0
  %341 = vmatpush1.bf16.msra.mxu0 %v267
  %342 = vmatprep.subr.bf16.mxu0 0
  %343 = vmatpush1.bf16.msra.mxu0 %v266
  %344 = vmatprep.subr.bf16.mxu0 0
  %345 = vmatpush2.bf16.msra.mxu0 0
  %346 = vmatprep.subr.bf16.mxu0 0
  %347 = vmatpush2.bf16.msra.mxu0 0
  %348 = vmatprep.subr.bf16.mxu0 0
  %349 = vmatpush2.bf16.msra.mxu0 0
  %350 = vmatprep.subr.bf16.mxu0 0
  %351 = vmatpush2.bf16.msra.mxu0 0
  %352 = vmatprep.subr.bf16.mxu0 0
  %353 = vmatpush2.bf16.msra.mxu0 0
  %354 = vmatprep.subr.bf16.mxu0 0
  %355 = vmatpush2.bf16.msra.mxu0 0
  %356 = vmatprep.subr.bf16.mxu0 0
  %357 = vmatpush2.bf16.msra.mxu0 0
  %358 = vmatprep.subr.bf16.mxu0 0
  %359 = vmatpush2.bf16.msra.mxu0 0
  %360 = vmatprep.mubr.bf16.mxu0 0
  %361 = vmatmul.mubr.bf16.gmra.mxu0 %v312
  %v362 = vpop.f32.mrf.mxu0
  %v363 = vadd.f32 %v278, %v362
  %v364 = vpop.f32.mrf.mxu0
  %v365 = vpop.f32.mrf.mxu0
  %v366 = vadd.f32 %v278, %v365
  %v367 = vpop.f32.mrf.mxu0
  %368 = vmatprep.mubr.bf16.mxu0 0
  %369 = vmatmul.mubr.bf16.gmra.mxu0 %v313
  %v370 = vpop.f32.mrf.mxu0
  %v371 = vadd.f32 %v278, %v370
  %v372 = vpop.f32.mrf.mxu0
  %v373 = vpop.f32.mrf.mxu0
  %v374 = vadd.f32 %v278, %v373
  %v375 = vpop.f32.mrf.mxu0
  %376 = vmatprep.mubr.bf16.mxu0 0
  %377 = vmatmul.mubr.bf16.gmra.mxu0 %v314
  %v378 = vpop.f32.mrf.mxu0
  %v379 = vadd.f32 %v278, %v378
  %v380 = vpop.f32.mrf.mxu0
  %v381 = vpop.f32.mrf.mxu0
  %v382 = vadd.f32 %v278, %v381
  %v383 = vpop.f32.mrf.mxu0
  %384 = vmatprep.mubr.bf16.mxu0 0
  %385 = vmatmul.mubr.bf16.gmra.mxu0 %v315
  %v386 = vpop.f32.mrf.mxu0
  %v387 = vadd.f32 %v278, %v386
  %v388 = vpop.f32.mrf.mxu0
  %v389 = vpop.f32.mrf.mxu0
  %v390 = vadd.f32 %v278, %v389
  %v391 = vpop.f32.mrf.mxu0
  %392 = vmatprep.mubr.bf16.mxu0 0
  %393 = vmatmul.mubr.bf16.gmra.mxu0 %v316
  %v394 = vpop.f32.mrf.mxu0
  %v395 = vadd.f32 %v278, %v394
  %v396 = vpop.f32.mrf.mxu0
  %v397 = vpop.f32.mrf.mxu0
  %v398 = vadd.f32 %v278, %v397
  %v399 = vpop.f32.mrf.mxu0
  %400 = vmatprep.mubr.bf16.mxu0 0
  %401 = vmatmul.mubr.bf16.gmra.mxu0 %v317
  %v402 = vpop.f32.mrf.mxu0
  %v403 = vadd.f32 %v278, %v402
  %v404 = vpop.f32.mrf.mxu0
  %v405 = vpop.f32.mrf.mxu0
  %v406 = vadd.f32 %v278, %v405
  %v407 = vpop.f32.mrf.mxu0
  %408 = vmatprep.mubr.bf16.mxu0 0
  %409 = vmatmul.mubr.bf16.gmra.mxu0 %v318
  %v410 = vpop.f32.mrf.mxu0
  %v411 = vadd.f32 %v278, %v410
  %v412 = vpop.f32.mrf.mxu0
  %v413 = vpop.f32.mrf.mxu0
  %v414 = vadd.f32 %v278, %v413
  %v415 = vpop.f32.mrf.mxu0
  %416 = vmatprep.mubr.bf16.mxu0 0
  %417 = vmatmul.mubr.bf16.gmra.mxu0 %v319
  %v418 = vpop.f32.mrf.mxu0
  %v419 = vadd.f32 %v278, %v418
  %v420 = vpop.f32.mrf.mxu0
  %v421 = vpop.f32.mrf.mxu0
  %v422 = vadd.f32 %v278, %v421
  %v423 = vpop.f32.mrf.mxu0
  %424 = vdwg.mxu0
  %v425 = vmax.f32 %v363, 0.0
  %v426 = vmax.f32 %v366, 0.0
  %v427 = vmax.f32 %v371, 0.0
  %v428 = vmax.f32 %v374, 0.0
  %v429 = vmax.f32 %v379, 0.0
  %v430 = vmax.f32 %v382, 0.0
  %v431 = vmax.f32 %v387, 0.0
  %v432 = vmax.f32 %v390, 0.0
  %v433 = vmax.f32 %v395, 0.0
  %v434 = vmax.f32 %v398, 0.0
  %v435 = vmax.f32 %v403, 0.0
  %v436 = vmax.f32 %v406, 0.0
  %v437 = vmax.f32 %v411, 0.0
  %v438 = vmax.f32 %v414, 0.0
  %v439 = vmax.f32 %v419, 0.0
  %v440 = vmax.f32 %v422, 0.0
  %v441 = vpack.c.bf16 %v426, %v425
  %v442 = vpack.c.bf16 %v428, %v427
  %v443 = vpack.c.bf16 %v430, %v429
  %v444 = vpack.c.bf16 %v432, %v431
  %v445 = vpack.c.bf16 %v434, %v433
  %v446 = vpack.c.bf16 %v436, %v435
  %v447 = vpack.c.bf16 %v438, %v437
  %v448 = vpack.c.bf16 %v440, %v439
  %v449 = vld [vmem:[%s3] sm:$0xf]
  %v450 = vld [vmem:[%s3 + $0x4] sm:$0xf]
  %v451 = vld [vmem:[%s3 + $0x8] sm:$0xf]
  %v452 = vld [vmem:[%s3 + $0xc] sm:$0xf]
  %v453 = vld [vmem:[%s3 + $0x10] sm:$0xf]
  %v454 = vld [vmem:[%s3 + $0x14] sm:$0xf]
  %v455 = vld [vmem:[%s3 + $0x18] sm:$0xf]
  %v456 = vld [vmem:[%s3 + $0x1c] sm:$0xf]
  %v457 = vld [vmem:[%s3 + $0x20] sm:$0xf]
  %v458 = vld [vmem:[%s3 + $0x24] sm:$0xf]
  %v459 = vld [vmem:[%s3 + $0x28] sm:$0xf]
  %v460 = vld [vmem:[%s3 + $0x2c] sm:$0xf]
  %v461 = vld [vmem:[%s3 + $0x30] sm:$0xf]
  %v462 = vld [vmem:[%s3 + $0x34] sm:$0xf]
  %v463 = vld [vmem:[%s3 + $0x38] sm:$0xf]
  %v464 = vld [vmem:[%s3 + $0x3c] sm:$0xf]
  %v465 = vld [vmem:[%s5] sm:$0x1]
  %v482 = vunpack.c.l.b16 %v449
  %v483 = vunpack.c.l.b16 %v450
  %v484 = vunpack.c.l.b16 %v451
  %v485 = vunpack.c.l.b16 %v452
  %v486 = vunpack.c.l.b16 %v453
  %v487 = vunpack.c.l.b16 %v454
  %v488 = vunpack.c.l.b16 %v455
  %v489 = vunpack.c.l.b16 %v456
  %v490 = vunpack.c.l.b16 %v457
  %v491 = vunpack.c.l.b16 %v458
  %v492 = vunpack.c.l.b16 %v459
  %v493 = vunpack.c.l.b16 %v460
  %v494 = vunpack.c.l.b16 %v461
  %v495 = vunpack.c.l.b16 %v462
  %v496 = vunpack.c.l.b16 %v463
  %v497 = vunpack.c.l.b16 %v464
  %v498 = vpack.c.b16 %v483, %v482
  %v499 = vpack.c.b16 %v485, %v484
  %v500 = vpack.c.b16 %v487, %v486
  %v501 = vpack.c.b16 %v489, %v488
  %v502 = vpack.c.b16 %v491, %v490
  %v503 = vpack.c.b16 %v493, %v492
  %v504 = vpack.c.b16 %v495, %v494
  %v505 = vpack.c.b16 %v497, %v496
  %514 = vmatprep.subr.bf16.mxu0 0
  %515 = vmatpush1.bf16.msra.mxu0 %v505
  %516 = vmatprep.subr.bf16.mxu0 0
  %517 = vmatpush1.bf16.msra.mxu0 %v504
  %518 = vmatprep.subr.bf16.mxu0 0
  %519 = vmatpush1.bf16.msra.mxu0 %v503
  %520 = vmatprep.subr.bf16.mxu0 0
  %521 = vmatpush1.bf16.msra.mxu0 %v502
  %522 = vmatprep.subr.bf16.mxu0 0
  %523 = vmatpush1.bf16.msra.mxu0 %v501
  %524 = vmatprep.subr.bf16.mxu0 0
  %525 = vmatpush1.bf16.msra.mxu0 %v500
  %526 = vmatprep.subr.bf16.mxu0 0
  %527 = vmatpush1.bf16.msra.mxu0 %v499
  %528 = vmatprep.subr.bf16.mxu0 0
  %529 = vmatpush1.bf16.msra.mxu0 %v498
  %530 = vmatprep.subr.bf16.mxu0 0
  %531 = vmatpush2.bf16.msra.mxu0 0
  %532 = vmatprep.subr.bf16.mxu0 0
  %533 = vmatpush2.bf16.msra.mxu0 0
  %534 = vmatprep.subr.bf16.mxu0 0
  %535 = vmatpush2.bf16.msra.mxu0 0
  %536 = vmatprep.subr.bf16.mxu0 0
  %537 = vmatpush2.bf16.msra.mxu0 0
  %538 = vmatprep.subr.bf16.mxu0 0
  %539 = vmatpush2.bf16.msra.mxu0 0
  %540 = vmatprep.subr.bf16.mxu0 0
  %541 = vmatpush2.bf16.msra.mxu0 0
  %542 = vmatprep.subr.bf16.mxu0 0
  %543 = vmatpush2.bf16.msra.mxu0 0
  %544 = vmatprep.subr.bf16.mxu0 0
  %545 = vmatpush2.bf16.msra.mxu0 0
  %546 = vmatprep.mubr.bf16.mxu0 0
  %547 = vmatmul.mubr.bf16.gmra.mxu0 %v441
  %v548 = vpop.f32.mrf.mxu0
  %v549 = vadd.f32 0.0, %v548
  %v550 = vpop.f32.mrf.mxu0
  %v551 = vpop.f32.mrf.mxu0
  %v552 = vadd.f32 0.0, %v551
  %v553 = vpop.f32.mrf.mxu0
  %554 = vmatprep.mubr.bf16.mxu0 0
  %555 = vmatmul.mubr.bf16.gmra.mxu0 %v442
  %v556 = vpop.f32.mrf.mxu0
  %v557 = vadd.f32 0.0, %v556
  %v558 = vpop.f32.mrf.mxu0
  %v559 = vpop.f32.mrf.mxu0
  %v560 = vadd.f32 0.0, %v559
  %v561 = vpop.f32.mrf.mxu0
  %562 = vmatprep.mubr.bf16.mxu0 0
  %563 = vmatmul.mubr.bf16.gmra.mxu0 %v443
  %v564 = vpop.f32.mrf.mxu0
  %v565 = vadd.f32 0.0, %v564
  %v566 = vpop.f32.mrf.mxu0
  %v567 = vpop.f32.mrf.mxu0
  %v568 = vadd.f32 0.0, %v567
  %v569 = vpop.f32.mrf.mxu0
  %570 = vmatprep.mubr.bf16.mxu0 0
  %571 = vmatmul.mubr.bf16.gmra.mxu0 %v444
  %v572 = vpop.f32.mrf.mxu0
  %v573 = vadd.f32 0.0, %v572
  %v574 = vpop.f32.mrf.mxu0
  %v575 = vpop.f32.mrf.mxu0
  %v576 = vadd.f32 0.0, %v575
  %v577 = vpop.f32.mrf.mxu0
  %578 = vmatprep.mubr.bf16.mxu0 0
  %579 = vmatmul.mubr.bf16.gmra.mxu0 %v445
  %v580 = vpop.f32.mrf.mxu0
  %v581 = vadd.f32 0.0, %v580
  %v582 = vpop.f32.mrf.mxu0
  %v583 = vpop.f32.mrf.mxu0
  %v584 = vadd.f32 0.0, %v583
  %v585 = vpop.f32.mrf.mxu0
  %586 = vmatprep.mubr.bf16.mxu0 0
  %587 = vmatmul.mubr.bf16.gmra.mxu0 %v446
  %v588 = vpop.f32.mrf.mxu0
  %v589 = vadd.f32 0.0, %v588
  %v590 = vpop.f32.mrf.mxu0
  %v591 = vpop.f32.mrf.mxu0
  %v592 = vadd.f32 0.0, %v591
  %v593 = vpop.f32.mrf.mxu0
  %594 = vmatprep.mubr.bf16.mxu0 0
  %595 = vmatmul.mubr.bf16.gmra.mxu0 %v447
  %v596 = vpop.f32.mrf.mxu0
  %v597 = vadd.f32 0.0, %v596
  %v598 = vpop.f32.mrf.mxu0
  %v599 = vpop.f32.mrf.mxu0
  %v600 = vadd.f32 0.0, %v599
  %v601 = vpop.f32.mrf.mxu0
  %602 = vmatprep.mubr.bf16.mxu0 0
  %603 = vmatmul.mubr.bf16.gmra.mxu0 %v448
  %v604 = vpop.f32.mrf.mxu0
  %v605 = vadd.f32 0.0, %v604
  %v606 = vpop.f32.mrf.mxu0
  %v607 = vpop.f32.mrf.mxu0
  %v608 = vadd.f32 0.0, %v607
  %v609 = vpop.f32.mrf.mxu0
  %610 = vdwg.mxu0
  %v611 = vpack.c.bf16 %v552, %v549
  %v612 = vpack.c.bf16 %v560, %v557
  %v613 = vpack.c.bf16 %v568, %v565
  %v614 = vpack.c.bf16 %v576, %v573
  %v615 = vpack.c.bf16 %v584, %v581
  %v616 = vpack.c.bf16 %v592, %v589
  %v617 = vpack.c.bf16 %v600, %v597
  %v618 = vpack.c.bf16 %v608, %v605
  %v620 = vlaneseq
  %v621 = vshrl.u32 %v620, 7
  %v622 = vsub.s32 0, %v621
  %v623 = vrot.slane %v465, %v622
  %625 = vmatprep.subr.bf16.mxu0 0
  %626 = vmatpush1.bf16.msra.mxu0 %v618
  %627 = vmatprep.subr.bf16.mxu0 0
  %628 = vmatpush1.bf16.msra.mxu0 %v617
  %629 = vmatprep.subr.bf16.mxu0 0
  %630 = vmatpush1.bf16.msra.mxu0 %v616
  %631 = vmatprep.subr.bf16.mxu0 0
  %632 = vmatpush1.bf16.msra.mxu0 %v615
  %633 = vmatprep.subr.bf16.mxu0 0
  %634 = vmatpush1.bf16.msra.mxu0 %v614
  %635 = vmatprep.subr.bf16.mxu0 0
  %636 = vmatpush1.bf16.msra.mxu0 %v613
  %637 = vmatprep.subr.bf16.mxu0 0
  %638 = vmatpush1.bf16.msra.mxu0 %v612
  %639 = vmatprep.subr.bf16.mxu0 0
  %640 = vmatpush1.bf16.msra.mxu0 %v611
  %641 = vmatprep.subr.bf16.mxu0 0
  %642 = vmatpush2.bf16.msra.mxu0 0
  %643 = vmatprep.subr.bf16.mxu0 0
  %644 = vmatpush2.bf16.msra.mxu0 0
  %645 = vmatprep.subr.bf16.mxu0 0
  %646 = vmatpush2.bf16.msra.mxu0 0
  %647 = vmatprep.subr.bf16.mxu0 0
  %648 = vmatpush2.bf16.msra.mxu0 0
  %649 = vmatprep.subr.bf16.mxu0 0
  %650 = vmatpush2.bf16.msra.mxu0 0
  %651 = vmatprep.subr.bf16.mxu0 0
  %652 = vmatpush2.bf16.msra.mxu0 0
  %653 = vmatprep.subr.bf16.mxu0 0
  %654 = vmatpush2.bf16.msra.mxu0 0
  %655 = vmatprep.subr.bf16.mxu0 0
  %656 = vmatpush2.bf16.msra.mxu0 0
  %657 = vmatprep.mubr.bf16.mxu0 0
  %658 = vmatmul.mubr.bf16.gmra.mxu0 %v312
  %v659 = vpop.f32.mrf.mxu0
  %v660 = vadd.f32 %v623, %v659
  %v661 = vpop.f32.mrf.mxu0
  %v662 = vpop.f32.mrf.mxu0
  %v663 = vadd.f32 %v623, %v662
  %v664 = vpop.f32.mrf.mxu0
  %665 = vmatprep.mubr.bf16.mxu0 0
  %666 = vmatmul.mubr.bf16.gmra.mxu0 %v313
  %v667 = vpop.f32.mrf.mxu0
  %v668 = vadd.f32 %v623, %v667
  %v669 = vpop.f32.mrf.mxu0
  %v670 = vpop.f32.mrf.mxu0
  %v671 = vadd.f32 %v623, %v670
  %v672 = vpop.f32.mrf.mxu0
  %673 = vmatprep.mubr.bf16.mxu0 0
  %674 = vmatmul.mubr.bf16.gmra.mxu0 %v314
  %v675 = vpop.f32.mrf.mxu0
  %v676 = vadd.f32 %v623, %v675
  %v677 = vpop.f32.mrf.mxu0
  %v678 = vpop.f32.mrf.mxu0
  %v679 = vadd.f32 %v623, %v678
  %v680 = vpop.f32.mrf.mxu0
  %681 = vmatprep.mubr.bf16.mxu0 0
  %682 = vmatmul.mubr.bf16.gmra.mxu0 %v315
  %v683 = vpop.f32.mrf.mxu0
  %v684 = vadd.f32 %v623, %v683
  %v685 = vpop.f32.mrf.mxu0
  %v686 = vpop.f32.mrf.mxu0
  %v687 = vadd.f32 %v623, %v686
  %v688 = vpop.f32.mrf.mxu0
  %689 = vmatprep.mubr.bf16.mxu0 0
  %690 = vmatmul.mubr.bf16.gmra.mxu0 %v316
  %v691 = vpop.f32.mrf.mxu0
  %v692 = vadd.f32 %v623, %v691
  %v693 = vpop.f32.mrf.mxu0
  %v694 = vpop.f32.mrf.mxu0
  %v695 = vadd.f32 %v623, %v694
  %v696 = vpop.f32.mrf.mxu0
  %697 = vmatprep.mubr.bf16.mxu0 0
  %698 = vmatmul.mubr.bf16.gmra.mxu0 %v317
  %v699 = vpop.f32.mrf.mxu0
  %v700 = vadd.f32 %v623, %v699
  %v701 = vpop.f32.mrf.mxu0
  %v702 = vpop.f32.mrf.mxu0
  %v703 = vadd.f32 %v623, %v702
  %v704 = vpop.f32.mrf.mxu0
  %705 = vmatprep.mubr.bf16.mxu0 0
  %706 = vmatmul.mubr.bf16.gmra.mxu0 %v318
  %v707 = vpop.f32.mrf.mxu0
  %v708 = vadd.f32 %v623, %v707
  %v709 = vpop.f32.mrf.mxu0
  %v710 = vpop.f32.mrf.mxu0
  %v711 = vadd.f32 %v623, %v710
  %v712 = vpop.f32.mrf.mxu0
  %713 = vmatprep.mubr.bf16.mxu0 0
  %714 = vmatmul.mubr.bf16.gmra.mxu0 %v319
  %v715 = vpop.f32.mrf.mxu0
  %v716 = vadd.f32 %v623, %v715
  %v717 = vpop.f32.mrf.mxu0
  %v718 = vpop.f32.mrf.mxu0
  %v719 = vadd.f32 %v623, %v718
  %v720 = vpop.f32.mrf.mxu0
  %721 = vdwg.mxu0
  %722 = vst [vmem:[%s6] sm:$0xff] %v660
  %723 = vst [vmem:[%s6 + $0x8] sm:$0xff] %v663
  %724 = vst [vmem:[%s6 + $0x10] sm:$0xff] %v668
  %725 = vst [vmem:[%s6 + $0x18] sm:$0xff] %v671
  %726 = vst [vmem:[%s6 + $0x20] sm:$0xff] %v676
  %727 = vst [vmem:[%s6 + $0x28] sm:$0xff] %v679
  %728 = vst [vmem:[%s6 + $0x30] sm:$0xff] %v684
  %729 = vst [vmem:[%s6 + $0x38] sm:$0xff] %v687
  %730 = vst [vmem:[%s6 + $0x40] sm:$0xff] %v692
  %731 = vst [vmem:[%s6 + $0x48] sm:$0xff] %v695
  %732 = vst [vmem:[%s6 + $0x50] sm:$0xff] %v700
  %733 = vst [vmem:[%s6 + $0x58] sm:$0xff] %v703
  %734 = vst [vmem:[%s6 + $0x60] sm:$0xff] %v708
  %735 = vst [vmem:[%s6 + $0x68] sm:$0xff] %v711
  %736 = vst [vmem:[%s6 + $0x70] sm:$0xff] %v716
  %737 = vst [vmem:[%s6 + $0x78] sm:$0xff] %v719
  // Predicated region
  $region26: #{gcn_forward.1} parent=0 // pred_check
    _
  $region27: #{gcn_forward.1} parent=0 // pred_check_branch
    %739 = sbr.rel (0) target = $region29
  $region28: #{gcn_forward.1} parent=0 // pred_region
    _
  $region29: #{gcn_forward.1} parent=0 // pred_fallthru
    _
  // Predicated region
  $region30: #{gcn_forward.1} parent=0 // pred_check
    _
  $region31: #{gcn_forward.1} parent=0 // pred_check_branch
    %741 = sbr.rel (0) target = $region33
  $region32: #{gcn_forward.1} parent=0 // pred_region
    _
  $region33: #{gcn_forward.1} parent=0 // pred_fallthru
    _

</llo_original>
